<compile_context>
chip_gen: v7x
topology: tpu7x:2x2x1
jax: 0.10.0
libtpu: 0.0.40
codegen_flags: <defaults>
</compile_context>

<pallas_src>
import functools

import jax
import jax.numpy as jnp
from jax.experimental import pallas as pl
from jax.experimental.pallas import tpu as pltpu


_LANE = 128
_NEG_INF = -1e30


def _round_up(n, m):
    return ((n + m - 1) // m) * m


# ----------------------------------------------------------------------------
# Kernel: one (TILE_B, .) batch tile of the fused 5-layer MLP + log-softmax.
# ----------------------------------------------------------------------------
def _net_kernel(x_ref,
                w1_ref, b1_ref,
                w2_ref, b2_ref,
                w3_ref, b3_ref,
                w4_ref, b4_ref,
                w5_ref, b5_ref,
                out_ref):
    h = x_ref[...]                                                # bf16 (TB, C)
    # layer 1: conv1(k=1) + bn1 (folded) + relu     -> (TB, 256)
    h = jnp.dot(h, w1_ref[...], preferred_element_type=jnp.float32) + b1_ref[...]
    h = jnp.maximum(h, 0.0).astype(jnp.bfloat16)
    # layer 2: conv2(k=1) + bn2 (folded) + relu     -> (TB, 256)
    h = jnp.dot(h, w2_ref[...], preferred_element_type=jnp.float32) + b2_ref[...]
    h = jnp.maximum(h, 0.0).astype(jnp.bfloat16)
    # layer 3: fc1 + bn4 (folded) + relu            -> (TB, 128)
    h = jnp.dot(h, w3_ref[...], preferred_element_type=jnp.float32) + b3_ref[...]
    h = jnp.maximum(h, 0.0).astype(jnp.bfloat16)
    # layer 4: fc2 + bn5 (folded) + relu            -> (TB, 128)
    h = jnp.dot(h, w4_ref[...], preferred_element_type=jnp.float32) + b4_ref[...]
    h = jnp.maximum(h, 0.0).astype(jnp.bfloat16)
    # layer 5: fc3                                   -> (TB, CLSp)
    z = jnp.dot(h, w5_ref[...], preferred_element_type=jnp.float32) + b5_ref[...]
    # LogSoftmax(dim=1).  Padded class columns carry bias = -1e30, so they do
    # not perturb the max or the normalizer.
    m = jnp.max(z, axis=-1, keepdims=True)
    lse = jnp.log(jnp.sum(jnp.exp(z - m), axis=-1, keepdims=True)) + m
    out_ref[...] = z - lse


# ----------------------------------------------------------------------------
# Wrapper: batch tiling + batch padding, slicing of the padded output.
# ----------------------------------------------------------------------------
@functools.partial(jax.jit, static_argnames=("classes", "tile_b"))
def net_forward(x, padded_params, classes, tile_b=512):
    """x: (B, C) float32.  padded_params: dict of lane-padded (W^T bf16, b f32)."""
    B, C = x.shape
    p = padded_params
    cls_pad = p["b5"].shape[1]

    # Batch tile: multiple of 16 sublanes (bf16 packing); shrink to fit small
    # batches exactly, cap at tile_b for large ones.
    tb = min(tile_b, _round_up(max(B, 16), 16))
    b_pad = _round_up(B, tb)

    # Only the batch axis is padded; the feature axis stays at its true size
    # (BlockSpec may use the full array dim for the last axis).
    xp = jnp.zeros((b_pad, C), jnp.bfloat16).at[:B, :].set(x.astype(jnp.bfloat16))

    args = (xp,
            p["w1"], p["b1"], p["w2"], p["b2"], p["w3"], p["b3"],
            p["w4"], p["b4"], p["w5"], p["b5"])

    in_specs = [pl.BlockSpec((tb, C), lambda i: (i, 0))]
    # Weights/biases: whole-array blocks, constant index_map -> DMA'd once and
    # kept resident in VMEM across all batch tiles.
    for a in args[1:]:
        in_specs.append(pl.BlockSpec(a.shape, lambda i: (0, 0)))

    out = pl.pallas_call(
        _net_kernel,
        out_shape=jax.ShapeDtypeStruct((b_pad, cls_pad), jnp.float32),
        grid_spec=pltpu.PrefetchScalarGridSpec(
            num_scalar_prefetch=0,
            grid=(b_pad // tb,),
            in_specs=in_specs,
            out_specs=pl.BlockSpec((tb, cls_pad), lambda i: (i, 0)),
        ),
        compiler_params=pltpu.CompilerParams(
            dimension_semantics=("parallel",)),
    )(*args)
    return out[:B, :classes]


# ----------------------------------------------------------------------------
# Parameter setup (plain JAX glue): BN folding + lane padding + bf16 cast.
# ----------------------------------------------------------------------------
def _fold_bn(w_t, b, gamma, beta, mean, var, eps=1e-5):
    """Fold eval-mode BatchNorm1d into the preceding linear layer.

    w_t: (F_in, F_out) transposed weight, b: (F_out,).  y = x @ w_eff + b_eff.
    """
    scale = gamma / jnp.sqrt(var + eps)
    shift = beta - mean * scale
    return w_t * scale[None, :], b * scale + shift


def init_params(key, num_channels, classes):
    """Deterministic synthetic parameters matching the PyTorch module shapes
    (BN folded, f32, unpadded) -- used by the pure-JAX reference."""
    dims = [
        (num_channels, 150, True),   # conv1 (k=1) + batchnorm1
        (150, 180, True),            # conv2 (k=1) + batchnorm2
        (180, 60, True),             # fc1 + batchnorm4
        (60, 40, True),              # fc2 + batchnorm5
        (40, classes, False),        # fc3 (no BN)
    ]
    params = {}
    for i, (fin, fout, has_bn) in enumerate(dims, start=1):
        key, kw, kb, kg, kbe, km, kv = jax.random.split(key, 7)
        bound = 1.0 / jnp.sqrt(jnp.float32(fin))
        w_t = jax.random.uniform(kw, (fin, fout), jnp.float32, -bound, bound)
        b = jax.random.uniform(kb, (fout,), jnp.float32, -bound, bound)
        if has_bn:
            gamma = 1.0 + 0.1 * jax.random.normal(kg, (fout,), jnp.float32)
            beta = 0.1 * jax.random.normal(kbe, (fout,), jnp.float32)
            mean = 0.1 * jax.random.normal(km, (fout,), jnp.float32)
            var = jnp.abs(1.0 + 0.1 * jax.random.normal(kv, (fout,), jnp.float32))
            w_eff, b_eff = _fold_bn(w_t, b, gamma, beta, mean, var)
        else:
            w_eff, b_eff = w_t, b
        params[f"w{i}"] = w_eff
        params[f"b{i}"] = b_eff
    return params


def pad_params(params, num_layers=5):
    """Lane-pad (128) the hidden/output dims, cast weights to bf16.

    Layer 1 keeps its true input dim (x is fed unpadded); layers >= 2 pad the
    input dim to match the padded output of the previous layer.  Padded
    columns of the LAST layer get bias = -1e30 so the padded logits are
    excluded from the log-softmax normalizer."""
    padded = {}
    for i in range(1, num_layers + 1):
        w = params[f"w{i}"]
        b = params[f"b{i}"].reshape(1, -1)
        fin, fout = w.shape
        fin_p = fin if i == 1 else _round_up(fin, _LANE)
        fout_p = _round_up(fout, _LANE)
        pad_bias = _NEG_INF if i == num_layers else 0.0
        w_p = jnp.zeros((fin_p, fout_p), jnp.float32).at[:fin, :fout].set(w)
        b_p = jnp.full((1, fout_p), pad_bias, jnp.float32).at[:, :fout].set(b)
        padded[f"w{i}"] = w_p.astype(jnp.bfloat16)
        padded[f"b{i}"] = b_p
    return padded


def net_reference(x, params):
    """Pure-JAX f32 reference of the same forward pass."""
    h = x
    for i in range(1, 5):
        h = jnp.maximum(h @ params[f"w{i}"] + params[f"b{i}"][None, :], 0.0)
    z = h @ params["w5"] + params["b5"][None, :]
    return z - jax.scipy.special.logsumexp(z, axis=-1, keepdims=True)


if __name__ == "__main__":
    NUM_CHANNELS = 16   # numChannels
    CLASSES = 8         # classes

    key = jax.random.PRNGKey(0)
    kx1, kx2, kp = jax.random.split(key, 3)
    params = init_params(kp, NUM_CHANNELS, CLASSES)
    padded = pad_params(params)

    ok = True
    # Case 1: tiny batch, single grid step.  Case 2: forced small tile ->
    # multi-tile grid with a ragged tail (exercises batch tiling + padding).
    for kx, B, tb in ((kx1, 8, 512), (kx2, 400, 128)):
        x = jax.random.normal(kx, (B, NUM_CHANNELS), jnp.float32)
        out = jax.block_until_ready(net_forward(x, padded, CLASSES, tile_b=tb))
        ref = net_reference(x, params)

        assert out.shape == (B, CLASSES)
        assert bool(jnp.all(jnp.isfinite(out)))
        # bf16 matmuls vs f32 reference -> loose tolerance on log-probs.
        assert jnp.allclose(out, ref, atol=0.1, rtol=0.1), (
            float(jnp.max(jnp.abs(out - ref))))
        # rows of log-softmax must sum (in prob space) to 1 (exact property of
        # the kernel output itself).
        assert jnp.allclose(jnp.sum(jnp.exp(out), axis=-1), 1.0, atol=1e-3)
        ok = ok and True

    if ok:
        print("KERNEL_OK")
</pallas_src>

<mosaic_0001>
module attributes {stable_mosaic.version = 11 : i64} {
  func.func @_net_kernel(%arg0: i32, %arg1: memref<16x16xbf16, #tpu.memory_space<vmem>>, %arg2: memref<16x256xbf16, #tpu.memory_space<vmem>>, %arg3: memref<1x256xf32, #tpu.memory_space<vmem>>, %arg4: memref<256x256xbf16, #tpu.memory_space<vmem>>, %arg5: memref<1x256xf32, #tpu.memory_space<vmem>>, %arg6: memref<256x128xbf16, #tpu.memory_space<vmem>>, %arg7: memref<1x128xf32, #tpu.memory_space<vmem>>, %arg8: memref<128x128xbf16, #tpu.memory_space<vmem>>, %arg9: memref<1x128xf32, #tpu.memory_space<vmem>>, %arg10: memref<128x128xbf16, #tpu.memory_space<vmem>>, %arg11: memref<1x128xf32, #tpu.memory_space<vmem>>, %arg12: memref<16x128xf32, #tpu.memory_space<vmem>>) attributes {dimension_semantics = [#tpu.dimension_semantics<parallel>], iteration_bounds = array<i64: 1>, scalar_prefetch = 0 : i64, scratch_operands = 0 : i64, tpu.core_type = #tpu.core_type<tc>, window_params = [{transform_indices = @transform_0, window_bounds = array<i64: 16, 16>}, {pipeline_mode = #tpu.pipeline_mode<synchronous>, transform_indices = @transform_1, window_bounds = array<i64: 16, 256>}, {pipeline_mode = #tpu.pipeline_mode<synchronous>, transform_indices = @transform_2, window_bounds = array<i64: 1, 256>}, {pipeline_mode = #tpu.pipeline_mode<synchronous>, transform_indices = @transform_3, window_bounds = array<i64: 256, 256>}, {pipeline_mode = #tpu.pipeline_mode<synchronous>, transform_indices = @transform_4, window_bounds = array<i64: 1, 256>}, {pipeline_mode = #tpu.pipeline_mode<synchronous>, transform_indices = @transform_5, window_bounds = array<i64: 256, 128>}, {pipeline_mode = #tpu.pipeline_mode<synchronous>, transform_indices = @transform_6, window_bounds = array<i64: 1, 128>}, {pipeline_mode = #tpu.pipeline_mode<synchronous>, transform_indices = @transform_7, window_bounds = array<i64: 128, 128>}, {pipeline_mode = #tpu.pipeline_mode<synchronous>, transform_indices = @transform_8, window_bounds = array<i64: 1, 128>}, {pipeline_mode = #tpu.pipeline_mode<synchronous>, transform_indices = @transform_9, window_bounds = array<i64: 128, 128>}, {pipeline_mode = #tpu.pipeline_mode<synchronous>, transform_indices = @transform_10, window_bounds = array<i64: 1, 128>}, {transform_indices = @transform_11, window_bounds = array<i64: 16, 128>}]} {
    %c0 = arith.constant 0 : index
    %c0_0 = arith.constant 0 : index
    %0 = vector.load %arg1[%c0, %c0_0] : memref<16x16xbf16, #tpu.memory_space<vmem>>, vector<16x16xbf16>
    %c0_1 = arith.constant 0 : index
    %c0_2 = arith.constant 0 : index
    %1 = vector.load %arg2[%c0_1, %c0_2] : memref<16x256xbf16, #tpu.memory_space<vmem>>, vector<16x256xbf16>
    %cst = arith.constant dense<0.000000e+00> : vector<16x256xf32>
    %2 = tpu.matmul %0, %1, %cst {dimension_numbers = #tpu.dot_dimension_numbers<[1], [0], [0], [1], [0, 0, 1, 1], [], []>} : vector<16x16xbf16>, vector<16x256xbf16>, vector<16x256xf32> -> vector<16x256xf32>
    %c0_3 = arith.constant 0 : index
    %c0_4 = arith.constant 0 : index
    %3 = vector.load %arg3[%c0_3, %c0_4] : memref<1x256xf32, #tpu.memory_space<vmem>>, vector<1x256xf32>
    %4 = vector.broadcast %3 : vector<1x256xf32> to vector<16x256xf32>
    %5 = arith.addf %2, %4 : vector<16x256xf32>
    %cst_5 = arith.constant 0.000000e+00 : f32
    %6 = vector.broadcast %cst_5 : f32 to vector<16x256xf32>
    %7 = arith.maximumf %5, %6 : vector<16x256xf32>
    %8 = arith.truncf %7 : vector<16x256xf32> to vector<16x256xbf16>
    %c0_6 = arith.constant 0 : index
    %c0_7 = arith.constant 0 : index
    %9 = vector.load %arg4[%c0_6, %c0_7] : memref<256x256xbf16, #tpu.memory_space<vmem>>, vector<256x256xbf16>
    %cst_8 = arith.constant dense<0.000000e+00> : vector<16x256xf32>
    %10 = tpu.matmul %8, %9, %cst_8 {dimension_numbers = #tpu.dot_dimension_numbers<[1], [0], [0], [1], [0, 0, 1, 1], [], []>} : vector<16x256xbf16>, vector<256x256xbf16>, vector<16x256xf32> -> vector<16x256xf32>
    %c0_9 = arith.constant 0 : index
    %c0_10 = arith.constant 0 : index
    %11 = vector.load %arg5[%c0_9, %c0_10] : memref<1x256xf32, #tpu.memory_space<vmem>>, vector<1x256xf32>
    %12 = vector.broadcast %11 : vector<1x256xf32> to vector<16x256xf32>
    %13 = arith.addf %10, %12 : vector<16x256xf32>
    %cst_11 = arith.constant 0.000000e+00 : f32
    %14 = vector.broadcast %cst_11 : f32 to vector<16x256xf32>
    %15 = arith.maximumf %13, %14 : vector<16x256xf32>
    %16 = arith.truncf %15 : vector<16x256xf32> to vector<16x256xbf16>
    %c0_12 = arith.constant 0 : index
    %c0_13 = arith.constant 0 : index
    %17 = vector.load %arg6[%c0_12, %c0_13] : memref<256x128xbf16, #tpu.memory_space<vmem>>, vector<256x128xbf16>
    %cst_14 = arith.constant dense<0.000000e+00> : vector<16x128xf32>
    %18 = tpu.matmul %16, %17, %cst_14 {dimension_numbers = #tpu.dot_dimension_numbers<[1], [0], [0], [1], [0, 0, 1, 1], [], []>} : vector<16x256xbf16>, vector<256x128xbf16>, vector<16x128xf32> -> vector<16x128xf32>
    %c0_15 = arith.constant 0 : index
    %c0_16 = arith.constant 0 : index
    %19 = vector.load %arg7[%c0_15, %c0_16] : memref<1x128xf32, #tpu.memory_space<vmem>>, vector<1x128xf32>
    %20 = vector.broadcast %19 : vector<1x128xf32> to vector<16x128xf32>
    %21 = arith.addf %18, %20 : vector<16x128xf32>
    %cst_17 = arith.constant 0.000000e+00 : f32
    %22 = vector.broadcast %cst_17 : f32 to vector<16x128xf32>
    %23 = arith.maximumf %21, %22 : vector<16x128xf32>
    %24 = arith.truncf %23 : vector<16x128xf32> to vector<16x128xbf16>
    %c0_18 = arith.constant 0 : index
    %c0_19 = arith.constant 0 : index
    %25 = vector.load %arg8[%c0_18, %c0_19] : memref<128x128xbf16, #tpu.memory_space<vmem>>, vector<128x128xbf16>
    %cst_20 = arith.constant dense<0.000000e+00> : vector<16x128xf32>
    %26 = tpu.matmul %24, %25, %cst_20 {dimension_numbers = #tpu.dot_dimension_numbers<[1], [0], [0], [1], [0, 0, 1, 1], [], []>} : vector<16x128xbf16>, vector<128x128xbf16>, vector<16x128xf32> -> vector<16x128xf32>
    %c0_21 = arith.constant 0 : index
    %c0_22 = arith.constant 0 : index
    %27 = vector.load %arg9[%c0_21, %c0_22] : memref<1x128xf32, #tpu.memory_space<vmem>>, vector<1x128xf32>
    %28 = vector.broadcast %27 : vector<1x128xf32> to vector<16x128xf32>
    %29 = arith.addf %26, %28 : vector<16x128xf32>
    %cst_23 = arith.constant 0.000000e+00 : f32
    %30 = vector.broadcast %cst_23 : f32 to vector<16x128xf32>
    %31 = arith.maximumf %29, %30 : vector<16x128xf32>
    %32 = arith.truncf %31 : vector<16x128xf32> to vector<16x128xbf16>
    %c0_24 = arith.constant 0 : index
    %c0_25 = arith.constant 0 : index
    %33 = vector.load %arg10[%c0_24, %c0_25] : memref<128x128xbf16, #tpu.memory_space<vmem>>, vector<128x128xbf16>
    %cst_26 = arith.constant dense<0.000000e+00> : vector<16x128xf32>
    %34 = tpu.matmul %32, %33, %cst_26 {dimension_numbers = #tpu.dot_dimension_numbers<[1], [0], [0], [1], [0, 0, 1, 1], [], []>} : vector<16x128xbf16>, vector<128x128xbf16>, vector<16x128xf32> -> vector<16x128xf32>
    %c0_27 = arith.constant 0 : index
    %c0_28 = arith.constant 0 : index
    %35 = vector.load %arg11[%c0_27, %c0_28] : memref<1x128xf32, #tpu.memory_space<vmem>>, vector<1x128xf32>
    %36 = vector.broadcast %35 : vector<1x128xf32> to vector<16x128xf32>
    %37 = arith.addf %34, %36 : vector<16x128xf32>
    %cst_29 = arith.constant dense<0xFF800000> : vector<16xf32>
    %38 = vector.multi_reduction <maximumf>, %37, %cst_29 [1] : vector<16x128xf32> to vector<16xf32>
    %39 = vector.shape_cast %38 : vector<16xf32> to vector<16x1xf32>
    %40 = vector.broadcast %39 : vector<16x1xf32> to vector<16x128xf32>
    %41 = arith.subf %37, %40 : vector<16x128xf32>
    %42 = math.exp %41 : vector<16x128xf32>
    %cst_30 = arith.constant dense<0.000000e+00> : vector<16xf32>
    %43 = vector.multi_reduction <add>, %42, %cst_30 [1] : vector<16x128xf32> to vector<16xf32>
    %44 = vector.shape_cast %43 : vector<16xf32> to vector<16x1xf32>
    %45 = math.log %44 : vector<16x1xf32>
    %46 = arith.addf %45, %39 : vector<16x1xf32>
    %47 = vector.broadcast %46 : vector<16x1xf32> to vector<16x128xf32>
    %48 = arith.subf %37, %47 : vector<16x128xf32>
    %c0_31 = arith.constant 0 : index
    %c0_32 = arith.constant 0 : index
    %49 = vector.load %arg12[%c0_31, %c0_32] : memref<16x128xf32, #tpu.memory_space<vmem>>, vector<16x128xf32>
    tpu.vector_store %arg12[%c0_31, %c0_32], %48 {strides = array<i32>} : memref<16x128xf32, #tpu.memory_space<vmem>>, vector<16x128xf32>,
    return
  }
  func.func @transform_0(%arg0: i32) -> (i32, i32) {
    %c0_i32 = arith.constant 0 : i32
    %c0_i32_0 = arith.constant 0 : i32
    return %arg0, %c0_i32 : i32, i32
  }
  func.func @transform_1(%arg0: i32) -> (i32, i32) {
    %c0_i32 = arith.constant 0 : i32
    %c0_i32_0 = arith.constant 0 : i32
    %c0_i32_1 = arith.constant 0 : i32
    return %c0_i32, %c0_i32_0 : i32, i32
  }
  func.func @transform_2(%arg0: i32) -> (i32, i32) {
    %c0_i32 = arith.constant 0 : i32
    %c0_i32_0 = arith.constant 0 : i32
    %c0_i32_1 = arith.constant 0 : i32
    return %c0_i32, %c0_i32_0 : i32, i32
  }
  func.func @transform_3(%arg0: i32) -> (i32, i32) {
    %c0_i32 = arith.constant 0 : i32
    %c0_i32_0 = arith.constant 0 : i32
    %c0_i32_1 = arith.constant 0 : i32
    return %c0_i32, %c0_i32_0 : i32, i32
  }
  func.func @transform_4(%arg0: i32) -> (i32, i32) {
    %c0_i32 = arith.constant 0 : i32
    %c0_i32_0 = arith.constant 0 : i32
    %c0_i32_1 = arith.constant 0 : i32
    return %c0_i32, %c0_i32_0 : i32, i32
  }
  func.func @transform_5(%arg0: i32) -> (i32, i32) {
    %c0_i32 = arith.constant 0 : i32
    %c0_i32_0 = arith.constant 0 : i32
    %c0_i32_1 = arith.constant 0 : i32
    return %c0_i32, %c0_i32_0 : i32, i32
  }
  func.func @transform_6(%arg0: i32) -> (i32, i32) {
    %c0_i32 = arith.constant 0 : i32
    %c0_i32_0 = arith.constant 0 : i32
    %c0_i32_1 = arith.constant 0 : i32
    return %c0_i32, %c0_i32_0 : i32, i32
  }
  func.func @transform_7(%arg0: i32) -> (i32, i32) {
    %c0_i32 = arith.constant 0 : i32
    %c0_i32_0 = arith.constant 0 : i32
    %c0_i32_1 = arith.constant 0 : i32
    return %c0_i32, %c0_i32_0 : i32, i32
  }
  func.func @transform_8(%arg0: i32) -> (i32, i32) {
    %c0_i32 = arith.constant 0 : i32
    %c0_i32_0 = arith.constant 0 : i32
    %c0_i32_1 = arith.constant 0 : i32
    return %c0_i32, %c0_i32_0 : i32, i32
  }
  func.func @transform_9(%arg0: i32) -> (i32, i32) {
    %c0_i32 = arith.constant 0 : i32
    %c0_i32_0 = arith.constant 0 : i32
    %c0_i32_1 = arith.constant 0 : i32
    return %c0_i32, %c0_i32_0 : i32, i32
  }
  func.func @transform_10(%arg0: i32) -> (i32, i32) {
    %c0_i32 = arith.constant 0 : i32
    %c0_i32_0 = arith.constant 0 : i32
    %c0_i32_1 = arith.constant 0 : i32
    return %c0_i32, %c0_i32_0 : i32, i32
  }
  func.func @transform_11(%arg0: i32) -> (i32, i32) {
    %c0_i32 = arith.constant 0 : i32
    %c0_i32_0 = arith.constant 0 : i32
    return %arg0, %c0_i32 : i32, i32
  }
}

</mosaic_0001>

<llo_original>
// kernel: net_forward.1
$region0: #{net_forward.1}
  #allocation0 [shape = 'u32[]', space=smem, size = 0x4, offset = 0x4, fixed_abs, tag = 'smem constant byte address 0x4 - core index']
  #allocation1 [shape = 'u32[144,128]{1,0:T(1,128)}', space=vmem, size = 0x12000, scoped, tag = 'internal scratch']
  %s0 = inlined_call_operand.vmem [shape: bf16[16,16], index: 0, kind: input, shape index: {}]
  %s1 = inlined_call_operand.vmem [shape: bf16[16,256], index: 1, kind: input, shape index: {}]
  %s2 = inlined_call_operand.vmem [shape: f32[1,256], index: 2, kind: input, shape index: {}]
  %s3 = inlined_call_operand.hbm [shape: bf16[256,256], index: 3, kind: input, shape index: {}]
  %s4 = inlined_call_operand.vmem [shape: f32[1,256], index: 4, kind: input, shape index: {}]
  %s5 = inlined_call_operand.hbm [shape: bf16[256,128], index: 5, kind: input, shape index: {}]
  %s6 = inlined_call_operand.vmem [shape: f32[1,128], index: 6, kind: input, shape index: {}]
  %s7 = inlined_call_operand.hbm [shape: bf16[128,128], index: 7, kind: input, shape index: {}]
  %s8 = inlined_call_operand.vmem [shape: f32[1,128], index: 8, kind: input, shape index: {}]
  %s9 = inlined_call_operand.hbm [shape: bf16[128,128], index: 9, kind: input, shape index: {}]
  %s10 = inlined_call_operand.vmem [shape: f32[1,128], index: 10, kind: input, shape index: {}]
  %s11 = inlined_call_operand.vmem [shape: f32[16,128], index: 11, kind: output, shape index: {}]
  %s12 = sld [smem:[#allocation0]]
  $region70: #{net_forward.1} parent=0
    _
  %s14 = ssub.s32 1, %s12
  %s15 = scalar_select 0, %s14, %s12
  $region1: #{net_forward.1} parent=0
    #allocation2 [shape = 'u8[131072]{0}', space=vmem, size = 0x20000, scoped, tag = 'input window, operand 3, single buffered']
    #allocation3 [shape = 's32[1]{0}', space=sflag, size = 0x4, scoped, tag = 'scoped memory for net_forward.1']
    #allocation4 [shape = 'u8[65536]{0}', space=vmem, size = 0x10000, scoped, tag = 'input window, operand 5, single buffered']
    #allocation5 [shape = 's32[1]{0}', space=sflag, size = 0x4, scoped, tag = 'scoped memory for net_forward.1']
    #allocation6 [shape = 'u8[32768]{0}', space=vmem, size = 0x8000, scoped, tag = 'input window, operand 7, single buffered']
    #allocation7 [shape = 'u8[32768]{0}', space=vmem, size = 0x8000, scoped, tag = 'input window, operand 9, single buffered']
    #allocation8 [shape = 's32[1]{0}', space=sflag, size = 0x4, scoped, tag = 'scoped memory for net_forward.1']
    %16 = vsyncpa [#allocation3], 0
    %17 = vsyncpa [#allocation5], 0
    %18 = vsyncpa [#allocation8], 0
    // Predicated region
    $region2: #{net_forward.1} parent=1 // pred_check
      _
    $region3: #{net_forward.1} parent=1 // pred_check_branch
      %20 = sbr.rel (0) target = $region5
    $region4: #{net_forward.1} parent=1 // pred_region
      _
    $region5: #{net_forward.1} parent=1 // pred_fallthru
      _
    // Predicated region
    $region6: #{net_forward.1} parent=1 // pred_check
      _
    $region7: #{net_forward.1} parent=1 // pred_check_branch
      %22 = sbr.rel (0) target = $region9
    $region8: #{net_forward.1} parent=1 // pred_region
      _
    $region9: #{net_forward.1} parent=1 // pred_fallthru
      _
    // Predicated region
    $region10: #{net_forward.1} parent=1 // pred_check
      _
    $region11: #{net_forward.1} parent=1 // pred_check_branch
      %24 = sbr.rel (0) target = $region13
    $region12: #{net_forward.1} parent=1 // pred_region
      _
    $region13: #{net_forward.1} parent=1 // pred_fallthru
      _
    // Predicated region
    $region14: #{net_forward.1} parent=1 // pred_check
      _
    $region15: #{net_forward.1} parent=1 // pred_check_branch
      %26 = sbr.rel (0) target = $region17
    $region16: #{net_forward.1} parent=1 // pred_region
      %s28 = ssub.s32 4096, 4096
      %29 = vsyncadd [#allocation3], %s28
      %s30 = sshll.u32 [#allocation2], 4
      %s31 = int_to_ptr.vmem [resolvable:$true] %s30
      %36 = dma.hbm_to_vmem [thread:$0]  %s3, 4096, %s31, [#allocation3], 128, 128, 8
    $region17: #{net_forward.1} parent=1 // pred_fallthru
      _
    // Predicated region
    $region18: #{net_forward.1} parent=1 // pred_check
      _
    $region19: #{net_forward.1} parent=1 // pred_check_branch
      %38 = sbr.rel (0) target = $region21
    $region20: #{net_forward.1} parent=1 // pred_region
      _
    $region21: #{net_forward.1} parent=1 // pred_fallthru
      _
    // Predicated region
    $region22: #{net_forward.1} parent=1 // pred_check
      _
    $region23: #{net_forward.1} parent=1 // pred_check_branch
      %40 = sbr.rel (0) target = $region25
    $region24: #{net_forward.1} parent=1 // pred_region
      %s42 = ssub.s32 2048, 2048
      %43 = vsyncadd [#allocation5], %s42
      %s44 = sshll.u32 [#allocation4], 4
      %s45 = int_to_ptr.vmem [resolvable:$true] %s44
      %50 = dma.hbm_to_vmem [thread:$0]  %s5, 2048, %s45, [#allocation5], 64, 64, 4
    $region25: #{net_forward.1} parent=1 // pred_fallthru
      _
    // Predicated region
    $region26: #{net_forward.1} parent=1 // pred_check
      _
    $region27: #{net_forward.1} parent=1 // pred_check_branch
      %52 = sbr.rel (0) target = $region29
    $region28: #{net_forward.1} parent=1 // pred_region
      _
    $region29: #{net_forward.1} parent=1 // pred_fallthru
      _
    // Predicated region
    $region30: #{net_forward.1} parent=1 // pred_check
      _
    $region31: #{net_forward.1} parent=1 // pred_check_branch
      %54 = sbr.rel (0) target = $region33
    $region32: #{net_forward.1} parent=1 // pred_region
      %s56 = ssub.s32 1024, 1024
      %57 = vsyncadd [#allocation5], %s56
      %s58 = sshll.u32 [#allocation6], 4
      %s59 = int_to_ptr.vmem [resolvable:$true] %s58
      %64 = dma.hbm_to_vmem [thread:$0]  %s7, 1024, %s59, [#allocation5], 64, 64, 4
    $region33: #{net_forward.1} parent=1 // pred_fallthru
      _
    // Predicated region
    $region34: #{net_forward.1} parent=1 // pred_check
      _
    $region35: #{net_forward.1} parent=1 // pred_check_branch
      %66 = sbr.rel (0) target = $region37
    $region36: #{net_forward.1} parent=1 // pred_region
      _
    $region37: #{net_forward.1} parent=1 // pred_fallthru
      _
    // Predicated region
    $region38: #{net_forward.1} parent=1 // pred_check
      _
    $region39: #{net_forward.1} parent=1 // pred_check_branch
      %68 = sbr.rel (0) target = $region41
    $region40: #{net_forward.1} parent=1 // pred_region
      %s70 = ssub.s32 1024, 1024
      %71 = vsyncadd [#allocation8], %s70
      %s72 = sshll.u32 [#allocation7], 4
      %s73 = int_to_ptr.vmem [resolvable:$true] %s72
      %78 = dma.hbm_to_vmem [thread:$0]  %s9, 1024, %s73, [#allocation8], 64, 64, 4
    $region41: #{net_forward.1} parent=1 // pred_fallthru
      _
    // Predicated region
    $region42: #{net_forward.1} parent=1 // pred_check
      _
    $region43: #{net_forward.1} parent=1 // pred_check_branch
      %80 = sbr.rel (0) target = $region45
    $region44: #{net_forward.1} parent=1 // pred_region
      _
    $region45: #{net_forward.1} parent=1 // pred_fallthru
      _
    // Predicated region
    $region46: #{net_forward.1} parent=1 // pred_check
      _
    $region47: #{net_forward.1} parent=1 // pred_check_branch
      %82 = sbr.rel (0) target = $region49
    $region48: #{net_forward.1} parent=1 // pred_region
      %83 = dma.done [#allocation3], 4096
    $region49: #{net_forward.1} parent=1 // pred_fallthru
      _
    // Predicated region
    $region50: #{net_forward.1} parent=1 // pred_check
      _
    $region51: #{net_forward.1} parent=1 // pred_check_branch
      %85 = sbr.rel (0) target = $region53
    $region52: #{net_forward.1} parent=1 // pred_region
      %86 = dma.done [#allocation5], 2048
    $region53: #{net_forward.1} parent=1 // pred_fallthru
      _
    // Predicated region
    $region54: #{net_forward.1} parent=1 // pred_check
      _
    $region55: #{net_forward.1} parent=1 // pred_check_branch
      %88 = sbr.rel (0) target = $region57
    $region56: #{net_forward.1} parent=1 // pred_region
      %89 = dma.done [#allocation5], 1024
    $region57: #{net_forward.1} parent=1 // pred_fallthru
      _
    // Predicated region
    $region58: #{net_forward.1} parent=1 // pred_check
      _
    $region59: #{net_forward.1} parent=1 // pred_check_branch
      %91 = sbr.rel (0) target = $region61
    $region60: #{net_forward.1} parent=1 // pred_region
      %92 = dma.done [#allocation8], 1024
    $region61: #{net_forward.1} parent=1 // pred_fallthru
      _
    %v94 = vld [vmem:[%s0] sm:$0xf]
    %v95 = vld [vmem:[%s0 + $0x4] sm:$0xf]
    %v96 = vld [vmem:[%s1] sm:$0xff]
    %v97 = vld [vmem:[%s1 + $0x8] sm:$0xff]
    %v98 = vld [vmem:[%s2] sm:$0x3]
    %v100 = vlaneseq
    %v101 = vshrl.u32 %v100, 7
    %v102 = vsub.s32 0, %v101
    %v103 = vrot.slane %v98, %v102
    %v104 = vlaneseq
    %v105 = vshrl.u32 %v104, 7
    %v106 = vsub.s32 1, %v105
    %v107 = vrot.slane %v98, %v106
    %v112 = vunpack.c.l.b16 %v94
    %v113 = vunpack.c.l.b16 %v95
    %v114 = vpack.c.b16 %v113, %v112
    %v117 = vunpack.c.l.b16 %v96
    %v118 = vunpack.c.h.b16 %v96
    %v119 = vunpack.c.l.b16 %v97
    %v120 = vunpack.c.h.b16 %v97
    %v121 = vpack.c.b16 %v119, %v117
    %v122 = vpack.c.b16 %v120, %v118
    %vm125 = vcmask 130048
    %v127 = vsel %vm125, %v114, 0
    %129 = vmatprep.subr.bf16.mxu0 %v122
    %130 = vmatpush1.bf16.msra.mxu0 %v121
    %131 = vmatprep.subr.bf16.mxu0 0
    %132 = vmatpush1.bf16.msra.mxu0 0
    %133 = vmatprep.subr.bf16.mxu0 0
    %134 = vmatpush1.bf16.msra.mxu0 0
    %135 = vmatprep.subr.bf16.mxu0 0
    %136 = vmatpush1.bf16.msra.mxu0 0
    %137 = vmatprep.subr.bf16.mxu0 0
    %138 = vmatpush1.bf16.msra.mxu0 0
    %139 = vmatprep.subr.bf16.mxu0 0
    %140 = vmatpush1.bf16.msra.mxu0 0
    %141 = vmatprep.subr.bf16.mxu0 0
    %142 = vmatpush1.bf16.msra.mxu0 0
    %143 = vmatprep.subr.bf16.mxu0 0
    %144 = vmatpush1.bf16.msra.mxu0 0
    %145 = vmatprep.subr.bf16.mxu0 0
    %146 = vmatpush1.bf16.msra.mxu0 0
    %147 = vmatprep.subr.bf16.mxu0 0
    %148 = vmatpush1.bf16.msra.mxu0 0
    %149 = vmatprep.subr.bf16.mxu0 0
    %150 = vmatpush1.bf16.msra.mxu0 0
    %151 = vmatprep.subr.bf16.mxu0 0
    %152 = vmatpush1.bf16.msra.mxu0 0
    %153 = vmatprep.subr.bf16.mxu0 0
    %154 = vmatpush1.bf16.msra.mxu0 0
    %155 = vmatprep.subr.bf16.mxu0 0
    %156 = vmatpush1.bf16.msra.mxu0 0
    %157 = vmatprep.subr.bf16.mxu0 0
    %158 = vmatpush1.bf16.msra.mxu0 0
    %159 = vmatprep.subr.bf16.mxu0 0
    %160 = vmatpush1.bf16.msra.mxu0 0
    %161 = vmatprep.mubr.bf16.mxu0 0
    %162 = vmatmul.mubr.bf16.gmra.mrb[0].mxu0 %v127
    %v163 = vpop.f32.mrb[0].mxu0
    %v164 = vadd.f32 %v103, %v163
    %v165 = vpop.f32.mrb[0].mxu0
    %v166 = vadd.f32 %v107, %v165
    %v167 = vpop.f32.mrb[0].mxu0
    %v168 = vadd.f32 %v103, %v167
    %v169 = vpop.f32.mrb[0].mxu0
    %v170 = vadd.f32 %v107, %v169
    %171 = vdwg.mxu0
    %v172 = vmax.f32 %v164, 0.0
    %v173 = vmax.f32 %v166, 0.0
    %v174 = vmax.f32 %v168, 0.0
    %v175 = vmax.f32 %v170, 0.0
    %v176 = vpack.c.bf16 %v174, %v172
    %v177 = vpack.c.bf16 %v175, %v173
    %v178 = vld [vmem:[#allocation2] sm:$0xff]
    %v179 = vld [vmem:[#allocation2 + $0x8] sm:$0xff]
    %v180 = vld [vmem:[#allocation2 + $0x10] sm:$0xff]
    %v181 = vld [vmem:[#allocation2 + $0x18] sm:$0xff]
    %v182 = vld [vmem:[#allocation2 + $0x20] sm:$0xff]
    %v183 = vld [vmem:[#allocation2 + $0x28] sm:$0xff]
    %v184 = vld [vmem:[#allocation2 + $0x30] sm:$0xff]
    %v185 = vld [vmem:[#allocation2 + $0x38] sm:$0xff]
    %v186 = vld [vmem:[#allocation2 + $0x40] sm:$0xff]
    %v187 = vld [vmem:[#allocation2 + $0x48] sm:$0xff]
    %v188 = vld [vmem:[#allocation2 + $0x50] sm:$0xff]
    %v189 = vld [vmem:[#allocation2 + $0x58] sm:$0xff]
    %v190 = vld [vmem:[#allocation2 + $0x60] sm:$0xff]
    %v191 = vld [vmem:[#allocation2 + $0x68] sm:$0xff]
    %v192 = vld [vmem:[#allocation2 + $0x70] sm:$0xff]
    %v193 = vld [vmem:[#allocation2 + $0x78] sm:$0xff]
    %v194 = vld [vmem:[#allocation2 + $0x80] sm:$0xff]
    %v195 = vld [vmem:[#allocation2 + $0x88] sm:$0xff]
    %v196 = vld [vmem:[#allocation2 + $0x90] sm:$0xff]
    %v197 = vld [vmem:[#allocation2 + $0x98] sm:$0xff]
    %v198 = vld [vmem:[#allocation2 + $0xa0] sm:$0xff]
    %v199 = vld [vmem:[#allocation2 + $0xa8] sm:$0xff]
    %v200 = vld [vmem:[#allocation2 + $0xb0] sm:$0xff]
    %v201 = vld [vmem:[#allocation2 + $0xb8] sm:$0xff]
    %v202 = vld [vmem:[#allocation2 + $0xc0] sm:$0xff]
    %v203 = vld [vmem:[#allocation2 + $0xc8] sm:$0xff]
    %v204 = vld [vmem:[#allocation2 + $0xd0] sm:$0xff]
    %v205 = vld [vmem:[#allocation2 + $0xd8] sm:$0xff]
    %v206 = vld [vmem:[#allocation2 + $0xe0] sm:$0xff]
    %v207 = vld [vmem:[#allocation2 + $0xe8] sm:$0xff]
    %v208 = vld [vmem:[#allocation2 + $0xf0] sm:$0xff]
    %v209 = vld [vmem:[#allocation2 + $0xf8] sm:$0xff]
    %v210 = vld [vmem:[%s4] sm:$0x3]
    %v212 = vlaneseq
    %v213 = vshrl.u32 %v212, 7
    %v214 = vsub.s32 0, %v213
    %v215 = vrot.slane %v210, %v214
    %v216 = vlaneseq
    %v217 = vshrl.u32 %v216, 7
    %v218 = vsub.s32 1, %v217
    %v219 = vrot.slane %v210, %v218
    %v254 = vunpack.c.l.b16 %v178
    %v255 = vunpack.c.h.b16 %v178
    %v256 = vunpack.c.l.b16 %v179
    %v257 = vunpack.c.h.b16 %v179
    %v258 = vunpack.c.l.b16 %v180
    %v259 = vunpack.c.h.b16 %v180
    %v260 = vunpack.c.l.b16 %v181
    %v261 = vunpack.c.h.b16 %v181
    %v262 = vunpack.c.l.b16 %v182
    %v263 = vunpack.c.h.b16 %v182
    %v264 = vunpack.c.l.b16 %v183
    %v265 = vunpack.c.h.b16 %v183
    %v266 = vunpack.c.l.b16 %v184
    %v267 = vunpack.c.h.b16 %v184
    %v268 = vunpack.c.l.b16 %v185
    %v269 = vunpack.c.h.b16 %v185
    %v270 = vunpack.c.l.b16 %v186
    %v271 = vunpack.c.h.b16 %v186
    %v272 = vunpack.c.l.b16 %v187
    %v273 = vunpack.c.h.b16 %v187
    %v274 = vunpack.c.l.b16 %v188
    %v275 = vunpack.c.h.b16 %v188
    %v276 = vunpack.c.l.b16 %v189
    %v277 = vunpack.c.h.b16 %v189
    %v278 = vunpack.c.l.b16 %v190
    %v279 = vunpack.c.h.b16 %v190
    %v280 = vunpack.c.l.b16 %v191
    %v281 = vunpack.c.h.b16 %v191
    %v282 = vunpack.c.l.b16 %v192
    %v283 = vunpack.c.h.b16 %v192
    %v284 = vunpack.c.l.b16 %v193
    %v285 = vunpack.c.h.b16 %v193
    %v286 = vunpack.c.l.b16 %v194
    %v287 = vunpack.c.h.b16 %v194
    %v288 = vunpack.c.l.b16 %v195
    %v289 = vunpack.c.h.b16 %v195
    %v290 = vunpack.c.l.b16 %v196
    %v291 = vunpack.c.h.b16 %v196
    %v292 = vunpack.c.l.b16 %v197
    %v293 = vunpack.c.h.b16 %v197
    %v294 = vunpack.c.l.b16 %v198
    %v295 = vunpack.c.h.b16 %v198
    %v296 = vunpack.c.l.b16 %v199
    %v297 = vunpack.c.h.b16 %v199
    %v298 = vunpack.c.l.b16 %v200
    %v299 = vunpack.c.h.b16 %v200
    %v300 = vunpack.c.l.b16 %v201
    %v301 = vunpack.c.h.b16 %v201
    %v302 = vunpack.c.l.b16 %v202
    %v303 = vunpack.c.h.b16 %v202
    %v304 = vunpack.c.l.b16 %v203
    %v305 = vunpack.c.h.b16 %v203
    %v306 = vunpack.c.l.b16 %v204
    %v307 = vunpack.c.h.b16 %v204
    %v308 = vunpack.c.l.b16 %v205
    %v309 = vunpack.c.h.b16 %v205
    %v310 = vunpack.c.l.b16 %v206
    %v311 = vunpack.c.h.b16 %v206
    %v312 = vunpack.c.l.b16 %v207
    %v313 = vunpack.c.h.b16 %v207
    %v314 = vunpack.c.l.b16 %v208
    %v315 = vunpack.c.h.b16 %v208
    %v316 = vunpack.c.l.b16 %v209
    %v317 = vunpack.c.h.b16 %v209
    %v318 = vpack.c.b16 %v256, %v254
    %v319 = vpack.c.b16 %v257, %v255
    %v320 = vpack.c.b16 %v260, %v258
    %v321 = vpack.c.b16 %v261, %v259
    %v322 = vpack.c.b16 %v264, %v262
    %v323 = vpack.c.b16 %v265, %v263
    %v324 = vpack.c.b16 %v268, %v266
    %v325 = vpack.c.b16 %v269, %v267
    %v326 = vpack.c.b16 %v272, %v270
    %v327 = vpack.c.b16 %v273, %v271
    %v328 = vpack.c.b16 %v276, %v274
    %v329 = vpack.c.b16 %v277, %v275
    %v330 = vpack.c.b16 %v280, %v278
    %v331 = vpack.c.b16 %v281, %v279
    %v332 = vpack.c.b16 %v284, %v282
    %v333 = vpack.c.b16 %v285, %v283
    %v334 = vpack.c.b16 %v288, %v286
    %v335 = vpack.c.b16 %v289, %v287
    %v336 = vpack.c.b16 %v292, %v290
    %v337 = vpack.c.b16 %v293, %v291
    %v338 = vpack.c.b16 %v296, %v294
    %v339 = vpack.c.b16 %v297, %v295
    %v340 = vpack.c.b16 %v300, %v298
    %v341 = vpack.c.b16 %v301, %v299
    %v342 = vpack.c.b16 %v304, %v302
    %v343 = vpack.c.b16 %v305, %v303
    %v344 = vpack.c.b16 %v308, %v306
    %v345 = vpack.c.b16 %v309, %v307
    %v346 = vpack.c.b16 %v312, %v310
    %v347 = vpack.c.b16 %v313, %v311
    %v348 = vpack.c.b16 %v316, %v314
    %v349 = vpack.c.b16 %v317, %v315
    %382 = vmatprep.subr.bf16.mxu0 %v319
    %383 = vmatpush1.bf16.msra.mxu0 %v318
    %384 = vmatprep.subr.bf16.mxu0 %v321
    %385 = vmatpush1.bf16.msra.mxu0 %v320
    %386 = vmatprep.subr.bf16.mxu0 %v323
    %387 = vmatpush1.bf16.msra.mxu0 %v322
    %388 = vmatprep.subr.bf16.mxu0 %v325
    %389 = vmatpush1.bf16.msra.mxu0 %v324
    %390 = vmatprep.subr.bf16.mxu0 %v327
    %391 = vmatpush1.bf16.msra.mxu0 %v326
    %392 = vmatprep.subr.bf16.mxu0 %v329
    %393 = vmatpush1.bf16.msra.mxu0 %v328
    %394 = vmatprep.subr.bf16.mxu0 %v331
    %395 = vmatpush1.bf16.msra.mxu0 %v330
    %396 = vmatprep.subr.bf16.mxu0 %v333
    %397 = vmatpush1.bf16.msra.mxu0 %v332
    %398 = vmatprep.subr.bf16.mxu0 %v335
    %399 = vmatpush1.bf16.msra.mxu0 %v334
    %400 = vmatprep.subr.bf16.mxu0 %v337
    %401 = vmatpush1.bf16.msra.mxu0 %v336
    %402 = vmatprep.subr.bf16.mxu0 %v339
    %403 = vmatpush1.bf16.msra.mxu0 %v338
    %404 = vmatprep.subr.bf16.mxu0 %v341
    %405 = vmatpush1.bf16.msra.mxu0 %v340
    %406 = vmatprep.subr.bf16.mxu0 %v343
    %407 = vmatpush1.bf16.msra.mxu0 %v342
    %408 = vmatprep.subr.bf16.mxu0 %v345
    %409 = vmatpush1.bf16.msra.mxu0 %v344
    %410 = vmatprep.subr.bf16.mxu0 %v347
    %411 = vmatpush1.bf16.msra.mxu0 %v346
    %412 = vmatprep.subr.bf16.mxu0 %v349
    %413 = vmatpush1.bf16.msra.mxu0 %v348
    %414 = vmatprep.mubr.bf16.mxu0 %v177
    %415 = vmatmul.mubr.bf16.gmra.mrb[0].mxu0 %v176
    %v416 = vpop.f32.mrb[0].mxu0
    %v417 = vadd.f32 %v215, %v416
    %v418 = vpop.f32.mrb[0].mxu0
    %v419 = vadd.f32 %v219, %v418
    %v420 = vpop.f32.mrb[0].mxu0
    %v421 = vadd.f32 %v215, %v420
    %v422 = vpop.f32.mrb[0].mxu0
    %v423 = vadd.f32 %v219, %v422
    %424 = vdwg.mxu0
    %v425 = vmax.f32 %v417, 0.0
    %v426 = vmax.f32 %v419, 0.0
    %v427 = vmax.f32 %v421, 0.0
    %v428 = vmax.f32 %v423, 0.0
    %v429 = vpack.c.bf16 %v427, %v425
    %v430 = vpack.c.bf16 %v428, %v426
    %v431 = vld [vmem:[#allocation4] sm:$0xf]
    %v432 = vld [vmem:[#allocation4 + $0x4] sm:$0xf]
    %v433 = vld [vmem:[#allocation4 + $0x8] sm:$0xf]
    %v434 = vld [vmem:[#allocation4 + $0xc] sm:$0xf]
    %v435 = vld [vmem:[#allocation4 + $0x10] sm:$0xf]
    %v436 = vld [vmem:[#allocation4 + $0x14] sm:$0xf]
    %v437 = vld [vmem:[#allocation4 + $0x18] sm:$0xf]
    %v438 = vld [vmem:[#allocation4 + $0x1c] sm:$0xf]
    %v439 = vld [vmem:[#allocation4 + $0x20] sm:$0xf]
    %v440 = vld [vmem:[#allocation4 + $0x24] sm:$0xf]
    %v441 = vld [vmem:[#allocation4 + $0x28] sm:$0xf]
    %v442 = vld [vmem:[#allocation4 + $0x2c] sm:$0xf]
    %v443 = vld [vmem:[#allocation4 + $0x30] sm:$0xf]
    %v444 = vld [vmem:[#allocation4 + $0x34] sm:$0xf]
    %v445 = vld [vmem:[#allocation4 + $0x38] sm:$0xf]
    %v446 = vld [vmem:[#allocation4 + $0x3c] sm:$0xf]
    %v447 = vld [vmem:[#allocation4 + $0x40] sm:$0xf]
    %v448 = vld [vmem:[#allocation4 + $0x44] sm:$0xf]
    %v449 = vld [vmem:[#allocation4 + $0x48] sm:$0xf]
    %v450 = vld [vmem:[#allocation4 + $0x4c] sm:$0xf]
    %v451 = vld [vmem:[#allocation4 + $0x50] sm:$0xf]
    %v452 = vld [vmem:[#allocation4 + $0x54] sm:$0xf]
    %v453 = vld [vmem:[#allocation4 + $0x58] sm:$0xf]
    %v454 = vld [vmem:[#allocation4 + $0x5c] sm:$0xf]
    %v455 = vld [vmem:[#allocation4 + $0x60] sm:$0xf]
    %v456 = vld [vmem:[#allocation4 + $0x64] sm:$0xf]
    %v457 = vld [vmem:[#allocation4 + $0x68] sm:$0xf]
    %v458 = vld [vmem:[#allocation4 + $0x6c] sm:$0xf]
    %v459 = vld [vmem:[#allocation4 + $0x70] sm:$0xf]
    %v460 = vld [vmem:[#allocation4 + $0x74] sm:$0xf]
    %v461 = vld [vmem:[#allocation4 + $0x78] sm:$0xf]
    %v462 = vld [vmem:[#allocation4 + $0x7c] sm:$0xf]
    %v463 = vld [vmem:[%s6] sm:$0x1]
    %v465 = vlaneseq
    %v466 = vshrl.u32 %v465, 7
    %v467 = vsub.s32 0, %v466
    %v468 = vrot.slane %v463, %v467
    %v502 = vunpack.c.l.b16 %v431
    %v503 = vunpack.c.l.b16 %v432
    %v504 = vunpack.c.l.b16 %v433
    %v505 = vunpack.c.l.b16 %v434
    %v506 = vunpack.c.l.b16 %v435
    %v507 = vunpack.c.l.b16 %v436
    %v508 = vunpack.c.l.b16 %v437
    %v509 = vunpack.c.l.b16 %v438
    %v510 = vunpack.c.l.b16 %v439
    %v511 = vunpack.c.l.b16 %v440
    %v512 = vunpack.c.l.b16 %v441
    %v513 = vunpack.c.l.b16 %v442
    %v514 = vunpack.c.l.b16 %v443
    %v515 = vunpack.c.l.b16 %v444
    %v516 = vunpack.c.l.b16 %v445
    %v517 = vunpack.c.l.b16 %v446
    %v518 = vunpack.c.l.b16 %v447
    %v519 = vunpack.c.l.b16 %v448
    %v520 = vunpack.c.l.b16 %v449
    %v521 = vunpack.c.l.b16 %v450
    %v522 = vunpack.c.l.b16 %v451
    %v523 = vunpack.c.l.b16 %v452
    %v524 = vunpack.c.l.b16 %v453
    %v525 = vunpack.c.l.b16 %v454
    %v526 = vunpack.c.l.b16 %v455
    %v527 = vunpack.c.l.b16 %v456
    %v528 = vunpack.c.l.b16 %v457
    %v529 = vunpack.c.l.b16 %v458
    %v530 = vunpack.c.l.b16 %v459
    %v531 = vunpack.c.l.b16 %v460
    %v532 = vunpack.c.l.b16 %v461
    %v533 = vunpack.c.l.b16 %v462
    %v534 = vpack.c.b16 %v503, %v502
    %v535 = vpack.c.b16 %v505, %v504
    %v536 = vpack.c.b16 %v507, %v506
    %v537 = vpack.c.b16 %v509, %v508
    %v538 = vpack.c.b16 %v511, %v510
    %v539 = vpack.c.b16 %v513, %v512
    %v540 = vpack.c.b16 %v515, %v514
    %v541 = vpack.c.b16 %v517, %v516
    %v542 = vpack.c.b16 %v519, %v518
    %v543 = vpack.c.b16 %v521, %v520
    %v544 = vpack.c.b16 %v523, %v522
    %v545 = vpack.c.b16 %v525, %v524
    %v546 = vpack.c.b16 %v527, %v526
    %v547 = vpack.c.b16 %v529, %v528
    %v548 = vpack.c.b16 %v531, %v530
    %v549 = vpack.c.b16 %v533, %v532
    %566 = vmatprep.subr.bf16.mxu0 0
    %567 = vmatpush1.bf16.msra.mxu0 %v534
    %568 = vmatprep.subr.bf16.mxu0 0
    %569 = vmatpush1.bf16.msra.mxu0 %v535
    %570 = vmatprep.subr.bf16.mxu0 0
    %571 = vmatpush1.bf16.msra.mxu0 %v536
    %572 = vmatprep.subr.bf16.mxu0 0
    %573 = vmatpush1.bf16.msra.mxu0 %v537
    %574 = vmatprep.subr.bf16.mxu0 0
    %575 = vmatpush1.bf16.msra.mxu0 %v538
    %576 = vmatprep.subr.bf16.mxu0 0
    %577 = vmatpush1.bf16.msra.mxu0 %v539
    %578 = vmatprep.subr.bf16.mxu0 0
    %579 = vmatpush1.bf16.msra.mxu0 %v540
    %580 = vmatprep.subr.bf16.mxu0 0
    %581 = vmatpush1.bf16.msra.mxu0 %v541
    %582 = vmatprep.subr.bf16.mxu0 0
    %583 = vmatpush1.bf16.msra.mxu0 %v542
    %584 = vmatprep.subr.bf16.mxu0 0
    %585 = vmatpush1.bf16.msra.mxu0 %v543
    %586 = vmatprep.subr.bf16.mxu0 0
    %587 = vmatpush1.bf16.msra.mxu0 %v544
    %588 = vmatprep.subr.bf16.mxu0 0
    %589 = vmatpush1.bf16.msra.mxu0 %v545
    %590 = vmatprep.subr.bf16.mxu0 0
    %591 = vmatpush1.bf16.msra.mxu0 %v546
    %592 = vmatprep.subr.bf16.mxu0 0
    %593 = vmatpush1.bf16.msra.mxu0 %v547
    %594 = vmatprep.subr.bf16.mxu0 0
    %595 = vmatpush1.bf16.msra.mxu0 %v548
    %596 = vmatprep.subr.bf16.mxu0 0
    %597 = vmatpush1.bf16.msra.mxu0 %v549
    %598 = vmatprep.mubr.bf16.mxu0 %v430
    %599 = vmatmul.mubr.bf16.gmra.mrb[0].mxu0 %v429
    %v600 = vpop.f32.mrb[0].mxu0
    %v601 = vadd.f32 %v468, %v600
    %v602 = vpop.f32.mrb[0].mxu0
    %v603 = vpop.f32.mrb[0].mxu0
    %v604 = vadd.f32 %v468, %v603
    %v605 = vpop.f32.mrb[0].mxu0
    %606 = vdwg.mxu0
    %v607 = vmax.f32 %v601, 0.0
    %v608 = vmax.f32 %v604, 0.0
    %v609 = vpack.c.bf16 %v608, %v607
    %v610 = vld [vmem:[#allocation6] sm:$0xf]
    %v611 = vld [vmem:[#allocation6 + $0x4] sm:$0xf]
    %v612 = vld [vmem:[#allocation6 + $0x8] sm:$0xf]
    %v613 = vld [vmem:[#allocation6 + $0xc] sm:$0xf]
    %v614 = vld [vmem:[#allocation6 + $0x10] sm:$0xf]
    %v615 = vld [vmem:[#allocation6 + $0x14] sm:$0xf]
    %v616 = vld [vmem:[#allocation6 + $0x18] sm:$0xf]
    %v617 = vld [vmem:[#allocation6 + $0x1c] sm:$0xf]
    %v618 = vld [vmem:[#allocation6 + $0x20] sm:$0xf]
    %v619 = vld [vmem:[#allocation6 + $0x24] sm:$0xf]
    %v620 = vld [vmem:[#allocation6 + $0x28] sm:$0xf]
    %v621 = vld [vmem:[#allocation6 + $0x2c] sm:$0xf]
    %v622 = vld [vmem:[#allocation6 + $0x30] sm:$0xf]
    %v623 = vld [vmem:[#allocation6 + $0x34] sm:$0xf]
    %v624 = vld [vmem:[#allocation6 + $0x38] sm:$0xf]
    %v625 = vld [vmem:[#allocation6 + $0x3c] sm:$0xf]
    %v626 = vld [vmem:[%s8] sm:$0x1]
    %v628 = vlaneseq
    %v629 = vshrl.u32 %v628, 7
    %v630 = vsub.s32 0, %v629
    %v631 = vrot.slane %v626, %v630
    %v649 = vunpack.c.l.b16 %v610
    %v650 = vunpack.c.l.b16 %v611
    %v651 = vunpack.c.l.b16 %v612
    %v652 = vunpack.c.l.b16 %v613
    %v653 = vunpack.c.l.b16 %v614
    %v654 = vunpack.c.l.b16 %v615
    %v655 = vunpack.c.l.b16 %v616
    %v656 = vunpack.c.l.b16 %v617
    %v657 = vunpack.c.l.b16 %v618
    %v658 = vunpack.c.l.b16 %v619
    %v659 = vunpack.c.l.b16 %v620
    %v660 = vunpack.c.l.b16 %v621
    %v661 = vunpack.c.l.b16 %v622
    %v662 = vunpack.c.l.b16 %v623
    %v663 = vunpack.c.l.b16 %v624
    %v664 = vunpack.c.l.b16 %v625
    %v665 = vpack.c.b16 %v650, %v649
    %v666 = vpack.c.b16 %v652, %v651
    %v667 = vpack.c.b16 %v654, %v653
    %v668 = vpack.c.b16 %v656, %v655
    %v669 = vpack.c.b16 %v658, %v657
    %v670 = vpack.c.b16 %v660, %v659
    %v671 = vpack.c.b16 %v662, %v661
    %v672 = vpack.c.b16 %v664, %v663
    %681 = vmatprep.subr.bf16.mxu0 0
    %682 = vmatpush1.bf16.msra.mxu0 %v665
    %683 = vmatprep.subr.bf16.mxu0 0
    %684 = vmatpush1.bf16.msra.mxu0 %v666
    %685 = vmatprep.subr.bf16.mxu0 0
    %686 = vmatpush1.bf16.msra.mxu0 %v667
    %687 = vmatprep.subr.bf16.mxu0 0
    %688 = vmatpush1.bf16.msra.mxu0 %v668
    %689 = vmatprep.subr.bf16.mxu0 0
    %690 = vmatpush1.bf16.msra.mxu0 %v669
    %691 = vmatprep.subr.bf16.mxu0 0
    %692 = vmatpush1.bf16.msra.mxu0 %v670
    %693 = vmatprep.subr.bf16.mxu0 0
    %694 = vmatpush1.bf16.msra.mxu0 %v671
    %695 = vmatprep.subr.bf16.mxu0 0
    %696 = vmatpush1.bf16.msra.mxu0 %v672
    %697 = vmatprep.subr.bf16.mxu0 0
    %698 = vmatpush1.bf16.msra.mxu0 0
    %699 = vmatprep.subr.bf16.mxu0 0
    %700 = vmatpush1.bf16.msra.mxu0 0
    %701 = vmatprep.subr.bf16.mxu0 0
    %702 = vmatpush1.bf16.msra.mxu0 0
    %703 = vmatprep.subr.bf16.mxu0 0
    %704 = vmatpush1.bf16.msra.mxu0 0
    %705 = vmatprep.subr.bf16.mxu0 0
    %706 = vmatpush1.bf16.msra.mxu0 0
    %707 = vmatprep.subr.bf16.mxu0 0
    %708 = vmatpush1.bf16.msra.mxu0 0
    %709 = vmatprep.subr.bf16.mxu0 0
    %710 = vmatpush1.bf16.msra.mxu0 0
    %711 = vmatprep.subr.bf16.mxu0 0
    %712 = vmatpush1.bf16.msra.mxu0 0
    %713 = vmatprep.mubr.bf16.mxu0 0
    %714 = vmatmul.mubr.bf16.gmra.mrb[0].mxu0 %v609
    %v715 = vpop.f32.mrb[0].mxu0
    %v716 = vadd.f32 %v631, %v715
    %v717 = vpop.f32.mrb[0].mxu0
    %v718 = vpop.f32.mrb[0].mxu0
    %v719 = vadd.f32 %v631, %v718
    %v720 = vpop.f32.mrb[0].mxu0
    %721 = vdwg.mxu0
    %v722 = vmax.f32 %v716, 0.0
    %v723 = vmax.f32 %v719, 0.0
    %v724 = vpack.c.bf16 %v723, %v722
    %v725 = vld [vmem:[#allocation7] sm:$0xf]
    %v726 = vld [vmem:[#allocation7 + $0x4] sm:$0xf]
    %v727 = vld [vmem:[#allocation7 + $0x8] sm:$0xf]
    %v728 = vld [vmem:[#allocation7 + $0xc] sm:$0xf]
    %v729 = vld [vmem:[#allocation7 + $0x10] sm:$0xf]
    %v730 = vld [vmem:[#allocation7 + $0x14] sm:$0xf]
    %v731 = vld [vmem:[#allocation7 + $0x18] sm:$0xf]
    %v732 = vld [vmem:[#allocation7 + $0x1c] sm:$0xf]
    %v733 = vld [vmem:[#allocation7 + $0x20] sm:$0xf]
    %v734 = vld [vmem:[#allocation7 + $0x24] sm:$0xf]
    %v735 = vld [vmem:[#allocation7 + $0x28] sm:$0xf]
    %v736 = vld [vmem:[#allocation7 + $0x2c] sm:$0xf]
    %v737 = vld [vmem:[#allocation7 + $0x30] sm:$0xf]
    %v738 = vld [vmem:[#allocation7 + $0x34] sm:$0xf]
    %v739 = vld [vmem:[#allocation7 + $0x38] sm:$0xf]
    %v740 = vld [vmem:[#allocation7 + $0x3c] sm:$0xf]
    %v741 = vld [vmem:[%s10] sm:$0x1]
    %v743 = vlaneseq
    %v744 = vshrl.u32 %v743, 7
    %v745 = vsub.s32 0, %v744
    %v746 = vrot.slane %v741, %v745
    %v764 = vunpack.c.l.b16 %v725
    %v765 = vunpack.c.l.b16 %v726
    %v766 = vunpack.c.l.b16 %v727
    %v767 = vunpack.c.l.b16 %v728
    %v768 = vunpack.c.l.b16 %v729
    %v769 = vunpack.c.l.b16 %v730
    %v770 = vunpack.c.l.b16 %v731
    %v771 = vunpack.c.l.b16 %v732
    %v772 = vunpack.c.l.b16 %v733
    %v773 = vunpack.c.l.b16 %v734
    %v774 = vunpack.c.l.b16 %v735
    %v775 = vunpack.c.l.b16 %v736
    %v776 = vunpack.c.l.b16 %v737
    %v777 = vunpack.c.l.b16 %v738
    %v778 = vunpack.c.l.b16 %v739
    %v779 = vunpack.c.l.b16 %v740
    %v780 = vpack.c.b16 %v765, %v764
    %v781 = vpack.c.b16 %v767, %v766
    %v782 = vpack.c.b16 %v769, %v768
    %v783 = vpack.c.b16 %v771, %v770
    %v784 = vpack.c.b16 %v773, %v772
    %v785 = vpack.c.b16 %v775, %v774
    %v786 = vpack.c.b16 %v777, %v776
    %v787 = vpack.c.b16 %v779, %v778
    %796 = vmatprep.subr.bf16.mxu0 0
    %797 = vmatpush1.bf16.msra.mxu0 %v780
    %798 = vmatprep.subr.bf16.mxu0 0
    %799 = vmatpush1.bf16.msra.mxu0 %v781
    %800 = vmatprep.subr.bf16.mxu0 0
    %801 = vmatpush1.bf16.msra.mxu0 %v782
    %802 = vmatprep.subr.bf16.mxu0 0
    %803 = vmatpush1.bf16.msra.mxu0 %v783
    %804 = vmatprep.subr.bf16.mxu0 0
    %805 = vmatpush1.bf16.msra.mxu0 %v784
    %806 = vmatprep.subr.bf16.mxu0 0
    %807 = vmatpush1.bf16.msra.mxu0 %v785
    %808 = vmatprep.subr.bf16.mxu0 0
    %809 = vmatpush1.bf16.msra.mxu0 %v786
    %810 = vmatprep.subr.bf16.mxu0 0
    %811 = vmatpush1.bf16.msra.mxu0 %v787
    %812 = vmatprep.subr.bf16.mxu0 0
    %813 = vmatpush1.bf16.msra.mxu0 0
    %814 = vmatprep.subr.bf16.mxu0 0
    %815 = vmatpush1.bf16.msra.mxu0 0
    %816 = vmatprep.subr.bf16.mxu0 0
    %817 = vmatpush1.bf16.msra.mxu0 0
    %818 = vmatprep.subr.bf16.mxu0 0
    %819 = vmatpush1.bf16.msra.mxu0 0
    %820 = vmatprep.subr.bf16.mxu0 0
    %821 = vmatpush1.bf16.msra.mxu0 0
    %822 = vmatprep.subr.bf16.mxu0 0
    %823 = vmatpush1.bf16.msra.mxu0 0
    %824 = vmatprep.subr.bf16.mxu0 0
    %825 = vmatpush1.bf16.msra.mxu0 0
    %826 = vmatprep.subr.bf16.mxu0 0
    %827 = vmatpush1.bf16.msra.mxu0 0
    %828 = vmatprep.mubr.bf16.mxu0 0
    %829 = vmatmul.mubr.bf16.gmra.mrb[0].mxu0 %v724
    %v830 = vpop.f32.mrb[0].mxu0
    %v831 = vadd.f32 %v746, %v830
    %v832 = vpop.f32.mrb[0].mxu0
    %v833 = vpop.f32.mrb[0].mxu0
    %v834 = vadd.f32 %v746, %v833
    %v835 = vpop.f32.mrb[0].mxu0
    %836 = vdwg.mxu0
    %837 = vmax.xlane.f32.xlu0 %v831
    %v838 = vpop.xlane.xlu0 %837
    %839 = vmax.xlane.f32.xlu0 %v834
    %v840 = vpop.xlane.xlu0 %839
    %v841 = vsub.f32 %v831, %v838
    %v842 = vsub.f32 %v834, %v840
    %v843 = vmul.f32 %v841, 1.442695
    %v844 = vpow.pop %v843
    %v845 = vmul.f32 %v842, 1.442695
    %v846 = vpow.pop %v845
    %847 = vadd.xlane.f32.xlu0 %v844
    %v848 = vpop.xlane.xlu0 %847
    %849 = vadd.xlane.f32.xlu0 %v846
    %v850 = vpop.xlane.xlu0 %849
    %v851 = vlog2.pop %v848
    %v852 = vmul.f32 %v851, 0.6931472
    %v853 = vlog2.pop %v850
    %v854 = vmul.f32 %v853, 0.6931472
    %v855 = vadd.f32 %v852, %v838
    %v856 = vadd.f32 %v854, %v840
    %v857 = vsub.f32 %v831, %v855
    %v858 = vsub.f32 %v834, %v856
    %859 = vst [vmem:[%s11] sm:$0xff] %v857
    %860 = vst [vmem:[%s11 + $0x8] sm:$0xff] %v858
    // Predicated region
    $region62: #{net_forward.1} parent=1 // pred_check
      _
    $region63: #{net_forward.1} parent=1 // pred_check_branch
      %862 = sbr.rel (0) target = $region65
    $region64: #{net_forward.1} parent=1 // pred_region
      _
    $region65: #{net_forward.1} parent=1 // pred_fallthru
      _
    // Predicated region
    $region66: #{net_forward.1} parent=1 // pred_check
      _
    $region67: #{net_forward.1} parent=1 // pred_check_branch
      %864 = sbr.rel (0) target = $region69
    $region68: #{net_forward.1} parent=1 // pred_region
      _
    $region69: #{net_forward.1} parent=1 // pred_fallthru
      _
    %865 = vsyncpa [#allocation3], 1
    %866 = vsyncpa [#allocation5], 1
    %867 = vsyncpa [#allocation8], 1

</llo_original>
